<compile_context>
chip_gen: v6e
topology: v6e:2x2x1
jax: 0.10.0
libtpu: 0.0.40
codegen_flags: <defaults>
</compile_context>

<pallas_src>
import jax
import jax.numpy as jnp
from jax.experimental import pallas as pl
from jax.experimental.pallas import tpu as pltpu


# ----------------------------------------------------------------------------
# Kernels
# ----------------------------------------------------------------------------
def _table_kernel(h_ref, b_row_ref, b_col_ref, s_ref):
    # h_ref: (N, D); b_row_ref: (N, 1); b_col_ref: (1, N); s_ref: (N, N).
    # MXU matmul contracting the feature dim of both operands (h @ h.T).
    s = jax.lax.dot_general(
        h_ref[...], h_ref[...],
        dimension_numbers=(((1,), (1,)), ((), ())),
        preferred_element_type=jnp.float32,
    )
    s_ref[...] = s + b_row_ref[...] + b_col_ref[...]


def _stream_kernel(h_src_ref, h_dst_ref, b_ref, out_ref):
    # h_*_ref : (D, TE) feature tiles -- edges on lanes, feature dim on
    # sublanes.  Cast after load so bf16 inputs stream at half the HBM bytes
    # and the dot accumulates in f32 (v5e's VPU has no bf16 anyway).
    hs = h_src_ref[...].astype(jnp.float32)
    hd = h_dst_ref[...].astype(jnp.float32)
    # TODO(synk): on v7x the DMA shadow is short enough that this sublane
    # reduce could be moved onto the idle MXU via ones(1, D) @ (hs * hd).
    dots = jnp.sum(hs * hd, axis=0, keepdims=True)        # (1, TE)
    out_ref[...] = dots + b_ref[...]


# ----------------------------------------------------------------------------
# Wrapper
# ----------------------------------------------------------------------------
def _round_up(x, m):
    return ((x + m - 1) // m) * m


def _cdiv(a, b):
    return -(-a // b)


def _pick_edge_tile(E, D, feat_itemsize, *, budget_bytes=12 * 1024 * 1024,
                    max_tile=32 * 1024):
    """Edge-tile geometry: D-adaptive size + divisor-based padding."""
    # Double-buffered VMEM footprint per edge column:
    #   2 feature inputs (D rows x itemsize) + bias input (4 B) + output (4 B),
    #   each x2 pipeline buffers.  Budget fits every generation's default
    #   scoped-VMEM limit (16 MiB on v5e), so no vmem_limit_bytes is needed.
    per_edge = 2 * (2 * D * feat_itemsize + 4 + 4)
    tile = max(128, min(max_tile, (budget_bytes // per_edge) // 128 * 128))

    e_pad0 = _round_up(E, 128)
    tile = min(tile, e_pad0)
    # Divisor-based scheme: waste < 128 padded lanes per tile instead of up
    # to a whole tile of dummy edges.
    num_tiles = _cdiv(e_pad0, tile)
    tile = _round_up(_cdiv(e_pad0, num_tiles), 128)
    return tile, num_tiles * tile


def _score_via_table(h, bias, src_ids, dst_ids, N, D, E):
    b_row = bias                                          # (N, 1)
    b_col = bias.reshape(1, N)                            # (1, N)

    s = pl.pallas_call(
        _table_kernel,
        out_shape=jax.ShapeDtypeStruct((N, N), jnp.float32),
        grid=(1,),
        in_specs=[
            pl.BlockSpec((N, D), lambda i: (0, 0)),
            pl.BlockSpec((N, 1), lambda i: (0, 0)),
            pl.BlockSpec((1, N), lambda i: (0, 0)),
        ],
        out_specs=pl.BlockSpec((N, N), lambda i: (0, 0)),
    )(h, b_row, b_col)

    # Per-edge gather of E scalars from the (N, N) table (plain XLA gather).
    flat = s.reshape(-1)
    pair = jnp.take(flat, src_ids * N + dst_ids)
    return pair.reshape(E, 1)


def _score_via_stream(h, bias, src_ids, dst_ids, N, D, E, edge_tile):
    feat_itemsize = jnp.dtype(h.dtype).itemsize
    if edge_tile is None:
        edge_tile, e_pad = _pick_edge_tile(E, D, feat_itemsize)
    else:
        edge_tile = max(128, (edge_tile // 128) * 128)
        e_pad0 = _round_up(E, 128)
        edge_tile = min(edge_tile, e_pad0)
        num_tiles = _cdiv(e_pad0, edge_tile)
        edge_tile = _round_up(_cdiv(e_pad0, num_tiles), 128)
        e_pad = num_tiles * edge_tile

    pad = e_pad - E
    if pad:
        # Node id 0 is always valid; padded lanes are sliced off below.
        zeros = jnp.zeros((pad,), src_ids.dtype)
        src_ids = jnp.concatenate([src_ids, zeros])
        dst_ids = jnp.concatenate([dst_ids, zeros])

    # Transpose the SMALL (N, D) table once and gather directly along the
    # lane axis: no (E_pad, D) -> (D, E_pad) relayout pass over the big slabs.
    h_t = h.T                                             # (D, N)
    h_src_t = jnp.take(h_t, src_ids, axis=1)              # (D, e_pad)
    h_dst_t = jnp.take(h_t, dst_ids, axis=1)              # (D, e_pad)

    # Single pre-summed, lane-dense bias stream.
    b1 = bias.reshape(-1)
    b_sum = (jnp.take(b1, src_ids) + jnp.take(b1, dst_ids)).reshape(1, e_pad)
    b_sum = b_sum.astype(jnp.float32)

    # TODO(synk): for very large E, fuse the endpoint gather into the kernel
    # (src/dst ids as (1, edge_tile) int32 blocks + VMEM-resident h) so the
    # gathered 2*(D, E) slabs are never written to / re-read from HBM.

    feat_spec = pl.BlockSpec((D, edge_tile), lambda i: (0, i))
    vec_spec = pl.BlockSpec((1, edge_tile), lambda i: (0, i))

    out = pl.pallas_call(
        _stream_kernel,
        out_shape=jax.ShapeDtypeStruct((1, e_pad), jnp.float32),
        grid=(e_pad // edge_tile,),
        in_specs=[feat_spec, feat_spec, vec_spec],
        out_specs=vec_spec,
        compiler_params=pltpu.CompilerParams(
            # TODO(synk): verify on a v7x trace that this axis is actually
            # split across both TensorCores; if not, switch to CORE_PARALLEL
            # or pl.core_map over a tensorcore mesh.
            dimension_semantics=("parallel",),
        ),
    )(h_src_t, h_dst_t, b_sum)

    return out[0, :E].reshape(E, 1)


def item_to_item_score(h, bias, src_ids, dst_ids, *, use_table=None,
                       edge_tile=None):
    """pair_score[e] = dot(h[src[e]], h[dst[e]]) + bias[src[e]] + bias[dst[e]].

    h        : (N, D) float32/bfloat16   node hidden states
    bias     : (N, 1) float32            per-node bias (the module parameter)
    src_ids  : (E,)   int32              edge source node ids
    dst_ids  : (E,)   int32              edge destination node ids
    returns  : (E, 1) float32
    """
    E = src_ids.shape[0]
    N, D = h.shape

    src_ids = src_ids.astype(jnp.int32)
    dst_ids = dst_ids.astype(jnp.int32)
    bias = bias.astype(jnp.float32)
    if h.dtype not in (jnp.bfloat16, jnp.float32):
        h = h.astype(jnp.float32)

    if use_table is None:
        # MXU table path whenever the (N, N) table comfortably fits VMEM;
        # for N << E this is orders of magnitude less HBM traffic.
        use_table = N <= 1024

    if use_table:
        return _score_via_table(h, bias, src_ids, dst_ids, N, D, E)
    return _score_via_stream(h, bias, src_ids, dst_ids, N, D, E, edge_tile)


if __name__ == "__main__":
    key = jax.random.PRNGKey(0)
    k_h, k_src, k_dst = jax.random.split(key, 3)

    N = 16     # number of 'productid' nodes in the full graph
    D = 32     # hidden size
    E = 200    # number of item-item edges (deliberately not a multiple of 128)

    # Node hidden states.
    h = jax.random.normal(k_h, (N, D), dtype=jnp.float32)

    # Module __init__: self.bias = nn.Parameter(torch.zeros(n_nodes, 1)).
    # Use a deterministic non-zero bias so the add path is exercised
    # (the original init is all-zeros; the (N, 1) shape is what matters).
    bias = jnp.arange(N, dtype=jnp.float32).reshape(N, 1) * 0.01

    # Edge endpoints of the item-item pair graph.
    src_ids = jax.random.randint(k_src, (E,), 0, N, dtype=jnp.int32)
    dst_ids = jax.random.randint(k_dst, (E,), 0, N, dtype=jnp.int32)

    # Pure-JAX reference (same semantics as fn.u_dot_v + _add_bias).
    ref = (jnp.sum(h[src_ids] * h[dst_ids], axis=-1, keepdims=True)
           + bias[src_ids] + bias[dst_ids])

    # Path 1: MXU score-table path (auto-selected because N is small).
    score_table = jax.block_until_ready(
        item_to_item_score(h, bias, src_ids, dst_ids))
    # Path 2: streaming path (forced, to exercise the large-N code path).
    score_stream = jax.block_until_ready(
        item_to_item_score(h, bias, src_ids, dst_ids, use_table=False))

    assert score_table.shape == (E, 1)
    assert score_stream.shape == (E, 1)
    assert jnp.allclose(score_table, ref, atol=1e-3, rtol=1e-3)
    assert jnp.allclose(score_stream, ref, atol=1e-5, rtol=1e-5)
    print("KERNEL_OK")
</pallas_src>

<mosaic_0001>
module attributes {stable_mosaic.version = 11 : i64} {
  func.func @_table_kernel(%arg0: i32, %arg1: memref<16x32xf32, #tpu.memory_space<vmem>>, %arg2: memref<16x1xf32, #tpu.memory_space<vmem>>, %arg3: memref<1x16xf32, #tpu.memory_space<vmem>>, %arg4: memref<16x16xf32, #tpu.memory_space<vmem>>) attributes {dimension_semantics = [#tpu.dimension_semantics<arbitrary>], iteration_bounds = array<i64: 1>, scalar_prefetch = 0 : i64, scratch_operands = 0 : i64, tpu.core_type = #tpu.core_type<tc>, window_params = [{pipeline_mode = #tpu.pipeline_mode<synchronous>, transform_indices = @transform_0, window_bounds = array<i64: 16, 32>}, {pipeline_mode = #tpu.pipeline_mode<synchronous>, transform_indices = @transform_1, window_bounds = array<i64: 16, 1>}, {pipeline_mode = #tpu.pipeline_mode<synchronous>, transform_indices = @transform_2, window_bounds = array<i64: 1, 16>}, {pipeline_mode = #tpu.pipeline_mode<synchronous>, transform_indices = @transform_3, window_bounds = array<i64: 16, 16>}]} {
    %c0 = arith.constant 0 : index
    %c0_0 = arith.constant 0 : index
    %0 = vector.load %arg1[%c0, %c0_0] : memref<16x32xf32, #tpu.memory_space<vmem>>, vector<16x32xf32>
    %c0_1 = arith.constant 0 : index
    %c0_2 = arith.constant 0 : index
    %1 = vector.load %arg1[%c0_1, %c0_2] : memref<16x32xf32, #tpu.memory_space<vmem>>, vector<16x32xf32>
    %cst = arith.constant dense<0.000000e+00> : vector<16x16xf32>
    %2 = tpu.matmul %0, %1, %cst {dimension_numbers = #tpu.dot_dimension_numbers<[1], [1], [0], [0], [0, 0, 1, 0], [], []>} : vector<16x32xf32>, vector<16x32xf32>, vector<16x16xf32> -> vector<16x16xf32>
    %c0_3 = arith.constant 0 : index
    %c0_4 = arith.constant 0 : index
    %3 = vector.load %arg2[%c0_3, %c0_4] : memref<16x1xf32, #tpu.memory_space<vmem>>, vector<16x1xf32>
    %4 = vector.broadcast %3 : vector<16x1xf32> to vector<16x16xf32>
    %5 = arith.addf %2, %4 : vector<16x16xf32>
    %c0_5 = arith.constant 0 : index
    %c0_6 = arith.constant 0 : index
    %6 = vector.load %arg3[%c0_5, %c0_6] : memref<1x16xf32, #tpu.memory_space<vmem>>, vector<1x16xf32>
    %7 = vector.broadcast %6 : vector<1x16xf32> to vector<16x16xf32>
    %8 = arith.addf %5, %7 : vector<16x16xf32>
    %c0_7 = arith.constant 0 : index
    %c0_8 = arith.constant 0 : index
    %9 = vector.load %arg4[%c0_7, %c0_8] : memref<16x16xf32, #tpu.memory_space<vmem>>, vector<16x16xf32>
    tpu.vector_store %arg4[%c0_7, %c0_8], %8 {strides = array<i32>} : memref<16x16xf32, #tpu.memory_space<vmem>>, vector<16x16xf32>,
    return
  }
  func.func @transform_0(%arg0: i32) -> (i32, i32) {
    %c0_i32 = arith.constant 0 : i32
    %c0_i32_0 = arith.constant 0 : i32
    %c0_i32_1 = arith.constant 0 : i32
    return %c0_i32, %c0_i32_0 : i32, i32
  }
  func.func @transform_1(%arg0: i32) -> (i32, i32) {
    %c0_i32 = arith.constant 0 : i32
    %c0_i32_0 = arith.constant 0 : i32
    %c0_i32_1 = arith.constant 0 : i32
    return %c0_i32, %c0_i32_0 : i32, i32
  }
  func.func @transform_2(%arg0: i32) -> (i32, i32) {
    %c0_i32 = arith.constant 0 : i32
    %c0_i32_0 = arith.constant 0 : i32
    %c0_i32_1 = arith.constant 0 : i32
    return %c0_i32, %c0_i32_0 : i32, i32
  }
  func.func @transform_3(%arg0: i32) -> (i32, i32) {
    %c0_i32 = arith.constant 0 : i32
    %c0_i32_0 = arith.constant 0 : i32
    %c0_i32_1 = arith.constant 0 : i32
    return %c0_i32, %c0_i32_0 : i32, i32
  }
}

</mosaic_0001>

<llo_original>
// kernel: tpu_custom_call.1
$region0: #{tpu_custom_call.1}
  #allocation0 [shape = 'u32[]', space=smem, size = 0x4, offset = 0x4, fixed_abs, tag = 'smem constant byte address 0x4 - core index']
  #allocation1 [shape = 'u32[144,128]{1,0:T(1,128)}', space=vmem, size = 0x12000, scoped, tag = 'internal scratch']
  %s0 = inlined_call_operand.vmem [shape: f32[16,32], index: 0, kind: input, shape index: {}]
  %s1 = inlined_call_operand.vmem [shape: f32[16,1], index: 1, kind: input, shape index: {}]
  %s2 = inlined_call_operand.vmem [shape: f32[1,16], index: 2, kind: input, shape index: {}]
  %s3 = inlined_call_operand.hbm [shape: f32[16,16], index: 3, kind: output, shape index: {}]
  %s4 = sld [smem:[#allocation0]]
  $region22: #{tpu_custom_call.1} parent=0
    _
  %s6 = ssub.s32 1, %s4
  %s7 = scalar_select 0, %s6, %s4
  $region1: #{tpu_custom_call.1} parent=0
    #allocation2 [shape = 'u8[8192]{0}', space=vmem, size = 0x2000, scoped, tag = 'output window, operand 0, single buffered']
    #allocation3 [shape = 's32[1]{0}', space=sflag, size = 0x4, scoped, tag = 'scoped memory for tpu_custom_call.1']
    %8 = vsyncpa [#allocation3], 0
    // Predicated region
    $region2: #{tpu_custom_call.1} parent=1 // pred_check
      _
    $region3: #{tpu_custom_call.1} parent=1 // pred_check_branch
      %10 = sbr.rel (0) target = $region5
    $region4: #{tpu_custom_call.1} parent=1 // pred_region
      _
    $region5: #{tpu_custom_call.1} parent=1 // pred_fallthru
      _
    // Predicated region
    $region6: #{tpu_custom_call.1} parent=1 // pred_check
      _
    $region7: #{tpu_custom_call.1} parent=1 // pred_check_branch
      %12 = sbr.rel (0) target = $region9
    $region8: #{tpu_custom_call.1} parent=1 // pred_region
      _
    $region9: #{tpu_custom_call.1} parent=1 // pred_fallthru
      _
    // Predicated region
    $region10: #{tpu_custom_call.1} parent=1 // pred_check
      _
    $region11: #{tpu_custom_call.1} parent=1 // pred_check_branch
      %14 = sbr.rel (0) target = $region13
    $region12: #{tpu_custom_call.1} parent=1 // pred_region
      _
    $region13: #{tpu_custom_call.1} parent=1 // pred_fallthru
      _
    %v15 = vld [vmem:[%s0] sm:$0xff]
    %v16 = vld [vmem:[%s0 + $0x8] sm:$0xff]
    %v17 = vld [vmem:[%s1] sm:$0xff]
    %v18 = vld [vmem:[%s1 + $0x8] sm:$0xff]
    %20 = vset.pattern.permute.xlu0 0
    %21 = vperm.xlu0 %20, %v17
    %v22 = vpop.permute.xlu0 %21
    %25 = vset.pattern.permute.xlu0 0
    %26 = vperm.xlu0 %25, %v18
    %v27 = vpop.permute.xlu0 %26
    %vm29 = vcmask 261120
    %v31 = vsel %vm29, %v15, 0
    %v34 = vsel %vm29, %v16, 0
    %36 = vmatprep.subr.mxu0 0.0
    %37 = vmatpush1.xpose.msra.mxu0 0.0
    %38 = vmatprep.subr.mxu0 0.0
    %39 = vmatpush1.xpose.msra.mxu0 0.0
    %40 = vmatprep.subr.mxu0 0.0
    %41 = vmatpush1.xpose.msra.mxu0 0.0
    %42 = vmatprep.subr.mxu0 0.0
    %43 = vmatpush1.xpose.msra.mxu0 0.0
    %44 = vmatprep.subr.mxu0 0.0
    %45 = vmatpush1.xpose.msra.mxu0 0.0
    %46 = vmatprep.subr.mxu0 0.0
    %47 = vmatpush1.xpose.msra.mxu0 0.0
    %48 = vmatprep.subr.mxu0 0.0
    %49 = vmatpush1.xpose.msra.mxu0 0.0
    %50 = vmatprep.subr.mxu0 0.0
    %51 = vmatpush1.xpose.msra.mxu0 0.0
    %52 = vmatprep.subr.mxu0 0.0
    %53 = vmatpush1.xpose.msra.mxu0 0.0
    %54 = vmatprep.subr.mxu0 0.0
    %55 = vmatpush1.xpose.msra.mxu0 0.0
    %56 = vmatprep.subr.mxu0 0.0
    %57 = vmatpush1.xpose.msra.mxu0 0.0
    %58 = vmatprep.subr.mxu0 0.0
    %59 = vmatpush1.xpose.msra.mxu0 0.0
    %60 = vmatprep.subr.mxu0 0.0
    %61 = vmatpush1.xpose.msra.mxu0 0.0
    %62 = vmatprep.subr.mxu0 0.0
    %63 = vmatpush1.xpose.msra.mxu0 0.0
    %64 = vmatprep.subr.mxu0 0.0
    %65 = vmatpush1.xpose.msra.mxu0 %v34
    %66 = vmatprep.subr.mxu0 0.0
    %67 = vmatpush1.xpose.msra.mxu0 %v31
    %68 = vmatprep.subr.mxu0 0.0
    %69 = vmatpush2.xpose.msra.mxu0 0.0
    %70 = vmatprep.subr.mxu0 0.0
    %71 = vmatpush2.xpose.msra.mxu0 0.0
    %72 = vmatprep.subr.mxu0 0.0
    %73 = vmatpush2.xpose.msra.mxu0 0.0
    %74 = vmatprep.subr.mxu0 0.0
    %75 = vmatpush2.xpose.msra.mxu0 0.0
    %76 = vmatprep.subr.mxu0 0.0
    %77 = vmatpush2.xpose.msra.mxu0 0.0
    %78 = vmatprep.subr.mxu0 0.0
    %79 = vmatpush2.xpose.msra.mxu0 0.0
    %80 = vmatprep.subr.mxu0 0.0
    %81 = vmatpush2.xpose.msra.mxu0 0.0
    %82 = vmatprep.subr.mxu0 0.0
    %83 = vmatpush2.xpose.msra.mxu0 0.0
    %84 = vmatprep.subr.mxu0 0.0
    %85 = vmatpush2.xpose.msra.mxu0 0.0
    %86 = vmatprep.subr.mxu0 0.0
    %87 = vmatpush2.xpose.msra.mxu0 0.0
    %88 = vmatprep.subr.mxu0 0.0
    %89 = vmatpush2.xpose.msra.mxu0 0.0
    %90 = vmatprep.subr.mxu0 0.0
    %91 = vmatpush2.xpose.msra.mxu0 0.0
    %92 = vmatprep.subr.mxu0 0.0
    %93 = vmatpush2.xpose.msra.mxu0 0.0
    %94 = vmatprep.subr.mxu0 0.0
    %95 = vmatpush2.xpose.msra.mxu0 0.0
    %96 = vmatprep.subr.mxu0 0.0
    %97 = vmatpush2.xpose.msra.mxu0 0.0
    %98 = vmatprep.subr.mxu0 0.0
    %99 = vmatpush2.xpose.msra.mxu0 0.0
    %100 = vmatprep.mubr.f32.mxu0 0.0
    %101 = vmatmul.mubr.f32.gmra.mxu0 %v31
    %v102 = vpop.f32.mrf.mxu0
    %v103 = vadd.f32 %v22, %v102
    %v104 = vpop.f32.mrf.mxu0
    %105 = vmatprep.mubr.f32.mxu0 0.0
    %106 = vmatmul.mubr.f32.gmra.mxu0 %v34
    %v107 = vpop.f32.mrf.mxu0
    %v108 = vadd.f32 %v27, %v107
    %v109 = vpop.f32.mrf.mxu0
    %110 = vdwg.mxu0
    %v111 = vld [vmem:[%s2] sm:$0x1]
    %v113 = vlaneseq
    %v114 = vshrl.u32 %v113, 7
    %v115 = vsub.s32 0, %v114
    %v116 = vrot.slane %v111, %v115
    %v118 = vadd.f32 %v103, %v116
    %v119 = vadd.f32 %v108, %v116
    %vm120 = vcmask 130048
    %121 = vst.msk [vmem:[#allocation2] sm:$0xff] %vm120, %v118
    %122 = vst.msk [vmem:[#allocation2 + $0x8] sm:$0xff] %vm120, %v119
    // Predicated region
    $region14: #{tpu_custom_call.1} parent=1 // pred_check
      _
    $region15: #{tpu_custom_call.1} parent=1 // pred_check_branch
      %124 = sbr.rel (0) target = $region17
    $region16: #{tpu_custom_call.1} parent=1 // pred_region
      %s126 = ssub.s32 256, 256
      %127 = vsyncadd [#allocation3], %s126
      %s128 = sshll.u32 [#allocation2], 4
      %s129 = int_to_ptr.vmem [resolvable:$true] %s128
      %134 = dma.vmem_to_hbm [thread:$0]  %s129, 256, %s3, [#allocation3], 128, 128, 8
    $region17: #{tpu_custom_call.1} parent=1 // pred_fallthru
      _
    // Predicated region
    $region18: #{tpu_custom_call.1} parent=1 // pred_check
      _
    $region19: #{tpu_custom_call.1} parent=1 // pred_check_branch
      %136 = sbr.rel (0) target = $region21
    $region20: #{tpu_custom_call.1} parent=1 // pred_region
      %137 = dma.done [#allocation3], 256
    $region21: #{tpu_custom_call.1} parent=1 // pred_fallthru
      _
    %138 = vsyncpa [#allocation3], 1

</llo_original>
